<compile_context>
chip_gen: v6e
topology: v6e:2x2x1
jax: 0.10.0
libtpu: 0.0.40
codegen_flags: <defaults>
</compile_context>

<pallas_src>
import jax
import jax.numpy as jnp
from jax.experimental import pallas as pl
from jax.experimental.pallas import tpu as pltpu


def disen3_kernel(x_ref, w_ref, b_ref, o_ref):
    # x_ref: (tile_n, Din)   w_ref: (Din, 3)   b_ref: (1, 3)   o_ref: (tile_n, 3)
    # Single MXU matmul (f32 accumulation), one fused affine+sigmoid.
    z = jnp.dot(x_ref[...], w_ref[...], preferred_element_type=jnp.float32)
    z = z + b_ref[...]                       # broadcast (1, 3) over rows
    o_ref[...] = (0.05 + 0.35 * jax.nn.sigmoid(z)).astype(o_ref.dtype)


def _assemble_block_weight(weights, Din, dtype):
    """(3, d) per-head weights -> (Din, 3) block-diagonal-placed matrix."""
    d = weights.shape[1]
    w_full = jnp.zeros((Din, 3), dtype=jnp.float32)
    for i in range(3):
        w_full = w_full.at[i * d:(i + 1) * d, i].set(
            weights[i].astype(jnp.float32))
    return w_full.astype(dtype)


def disen3_head(x, weights, biases, *, tile_n=None,
                vmem_limit_bytes=64 << 20):
    """x: (N, in_dim), weights: (3, in_dim//4), biases: (3,) -> (N, 3)."""
    N, D = x.shape
    d = D // 4
    assert weights.shape == (3, d)

    # Only DMA the 3 used chunks if that keeps the lane axis aligned to 128.
    Din = 3 * d if (3 * d) % 128 == 0 else D

    itemsize = jnp.dtype(x.dtype).itemsize
    # Sublane multiple: 16 for packed sub-32-bit dtypes, 8 for 32-bit.
    mult = 16 if itemsize < 4 else 8

    if tile_n is None:
        # Conservative double-buffered x-tile budget that fits all generations
        # (v7x has 64 MiB physical / 32 MiB default-scoped VMEM).
        budget = 24 << 20
        row_bytes = max(1, Din * itemsize)
        tile_n = budget // (2 * row_bytes)
        tile_n = max(mult, min(2048, tile_n))

    # Clamp to (padded) N and round to a sublane-friendly multiple.
    n_round = ((N + mult - 1) // mult) * mult
    tile_n = min(tile_n, n_round)
    tile_n = max(mult, (tile_n // mult) * mult)

    # Pad rows so the grid divides evenly (padded rows are discarded at the end).
    n_pad = ((N + tile_n - 1) // tile_n) * tile_n
    if n_pad != N:
        x = jnp.pad(x, ((0, n_pad - N), (0, 0)))

    w_full = _assemble_block_weight(weights, Din, x.dtype)   # (Din, 3)
    b2 = biases.reshape(1, 3).astype(jnp.float32)            # (1, 3)

    out = pl.pallas_call(
        disen3_kernel,
        out_shape=jax.ShapeDtypeStruct((n_pad, 3), x.dtype),
        grid_spec=pltpu.PrefetchScalarGridSpec(
            num_scalar_prefetch=0,
            grid=(n_pad // tile_n,),
            in_specs=[
                pl.BlockSpec((tile_n, Din), lambda i: (i, 0)),
                pl.BlockSpec((Din, 3), lambda i: (0, 0)),
                pl.BlockSpec((1, 3), lambda i: (0, 0)),
            ],
            out_specs=pl.BlockSpec((tile_n, 3), lambda i: (i, 0)),
        ),
        compiler_params=pltpu.CompilerParams(
            dimension_semantics=("parallel",),
            vmem_limit_bytes=vmem_limit_bytes),
    )(x, w_full, b2)

    return out[:N] if n_pad != N else out


def disen3_head_ref(x, weights, biases):
    """Pure-JAX reference matching the PyTorch forward."""
    N, D = x.shape
    d = D // 4
    outs = []
    for i in range(3):
        xi = x[:, i * d:(i + 1) * d]
        z = xi @ weights[i].reshape(d, 1) + biases[i]
        outs.append(0.05 + 0.35 * jax.nn.sigmoid(z))
    return jnp.concatenate(outs, axis=1)


if __name__ == "__main__":
    # Small shapes consistent with the module: in_dim=32 (divisible by k=4).
    N, in_dim, k = 16, 32, 4
    d = in_dim // k

    key = jax.random.PRNGKey(0)
    kx, kw, kb = jax.random.split(key, 3)

    x = jax.random.normal(kx, (N, in_dim), dtype=jnp.float32)

    # Deterministic parameter init, mimicking nn.Linear's U(-1/sqrt(fan_in), ..)
    bound = 1.0 / jnp.sqrt(jnp.float32(d))
    weights = jax.random.uniform(kw, (3, d), minval=-bound, maxval=bound,
                                 dtype=jnp.float32)
    biases = jax.random.uniform(kb, (3,), minval=-bound, maxval=bound,
                                dtype=jnp.float32)

    out = disen3_head(x, weights, biases)
    out = jax.block_until_ready(out)

    ref = disen3_head_ref(x, weights, biases)
    assert out.shape == (N, 3)
    assert jnp.allclose(out, ref, atol=1e-5, rtol=1e-5)

    # Also exercise a larger, multi-tile shape to validate the padded/tiled path.
    N2, in_dim2 = 3000, 512
    d2 = in_dim2 // 4
    kx2, kw2, kb2 = jax.random.split(jax.random.PRNGKey(1), 3)
    x2 = jax.random.normal(kx2, (N2, in_dim2), dtype=jnp.float32)
    bound2 = 1.0 / jnp.sqrt(jnp.float32(d2))
    w2 = jax.random.uniform(kw2, (3, d2), minval=-bound2, maxval=bound2,
                            dtype=jnp.float32)
    b2 = jax.random.uniform(kb2, (3,), minval=-bound2, maxval=bound2,
                            dtype=jnp.float32)
    out2 = jax.block_until_ready(disen3_head(x2, w2, b2, tile_n=1024))
    ref2 = disen3_head_ref(x2, w2, b2)
    assert out2.shape == (N2, 3)
    assert jnp.allclose(out2, ref2, atol=1e-4, rtol=1e-4)

    print("KERNEL_OK")
</pallas_src>

<mosaic_0001>
module attributes {stable_mosaic.version = 11 : i64} {
  func.func @disen3_kernel(%arg0: i32, %arg1: memref<16x32xf32, #tpu.memory_space<vmem>>, %arg2: memref<32x3xf32, #tpu.memory_space<vmem>>, %arg3: memref<1x3xf32, #tpu.memory_space<vmem>>, %arg4: memref<16x3xf32, #tpu.memory_space<vmem>>) attributes {dimension_semantics = [#tpu.dimension_semantics<parallel>], iteration_bounds = array<i64: 1>, scalar_prefetch = 0 : i64, scratch_operands = 0 : i64, tpu.core_type = #tpu.core_type<tc>, window_params = [{transform_indices = @transform_0, window_bounds = array<i64: 16, 32>}, {pipeline_mode = #tpu.pipeline_mode<synchronous>, transform_indices = @transform_1, window_bounds = array<i64: 32, 3>}, {pipeline_mode = #tpu.pipeline_mode<synchronous>, transform_indices = @transform_2, window_bounds = array<i64: 1, 3>}, {transform_indices = @transform_3, window_bounds = array<i64: 16, 3>}]} {
    %c0 = arith.constant 0 : index
    %c0_0 = arith.constant 0 : index
    %0 = vector.load %arg1[%c0, %c0_0] : memref<16x32xf32, #tpu.memory_space<vmem>>, vector<16x32xf32>
    %c0_1 = arith.constant 0 : index
    %c0_2 = arith.constant 0 : index
    %1 = vector.load %arg2[%c0_1, %c0_2] : memref<32x3xf32, #tpu.memory_space<vmem>>, vector<32x3xf32>
    %cst = arith.constant dense<0.000000e+00> : vector<16x3xf32>
    %2 = tpu.matmul %0, %1, %cst {dimension_numbers = #tpu.dot_dimension_numbers<[1], [0], [0], [1], [0, 0, 1, 1], [], []>} : vector<16x32xf32>, vector<32x3xf32>, vector<16x3xf32> -> vector<16x3xf32>
    %c0_3 = arith.constant 0 : index
    %c0_4 = arith.constant 0 : index
    %3 = vector.load %arg3[%c0_3, %c0_4] : memref<1x3xf32, #tpu.memory_space<vmem>>, vector<1x3xf32>
    %4 = vector.broadcast %3 : vector<1x3xf32> to vector<16x3xf32>
    %5 = arith.addf %2, %4 : vector<16x3xf32>
    %6 = arith.negf %5 : vector<16x3xf32>
    %7 = math.exp %6 : vector<16x3xf32>
    %cst_5 = arith.constant 1.000000e+00 : f32
    %8 = vector.broadcast %cst_5 : f32 to vector<16x3xf32>
    %9 = arith.addf %8, %7 : vector<16x3xf32>
    %10 = arith.divf %8, %9 : vector<16x3xf32>
    %cst_6 = arith.constant 3.500000e-01 : f32
    %11 = vector.broadcast %cst_6 : f32 to vector<16x3xf32>
    %12 = arith.mulf %11, %10 : vector<16x3xf32>
    %cst_7 = arith.constant 5.000000e-02 : f32
    %13 = vector.broadcast %cst_7 : f32 to vector<16x3xf32>
    %14 = arith.addf %13, %12 : vector<16x3xf32>
    %c0_8 = arith.constant 0 : index
    %c0_9 = arith.constant 0 : index
    %15 = vector.load %arg4[%c0_8, %c0_9] : memref<16x3xf32, #tpu.memory_space<vmem>>, vector<16x3xf32>
    tpu.vector_store %arg4[%c0_8, %c0_9], %14 {strides = array<i32>} : memref<16x3xf32, #tpu.memory_space<vmem>>, vector<16x3xf32>,
    return
  }
  func.func @transform_0(%arg0: i32) -> (i32, i32) {
    %c0_i32 = arith.constant 0 : i32
    %c0_i32_0 = arith.constant 0 : i32
    return %arg0, %c0_i32 : i32, i32
  }
  func.func @transform_1(%arg0: i32) -> (i32, i32) {
    %c0_i32 = arith.constant 0 : i32
    %c0_i32_0 = arith.constant 0 : i32
    %c0_i32_1 = arith.constant 0 : i32
    return %c0_i32, %c0_i32_0 : i32, i32
  }
  func.func @transform_2(%arg0: i32) -> (i32, i32) {
    %c0_i32 = arith.constant 0 : i32
    %c0_i32_0 = arith.constant 0 : i32
    %c0_i32_1 = arith.constant 0 : i32
    return %c0_i32, %c0_i32_0 : i32, i32
  }
  func.func @transform_3(%arg0: i32) -> (i32, i32) {
    %c0_i32 = arith.constant 0 : i32
    %c0_i32_0 = arith.constant 0 : i32
    return %arg0, %c0_i32 : i32, i32
  }
}

</mosaic_0001>

<llo_original>
// kernel: tpu_custom_call.1
$region0: #{tpu_custom_call.1}
  #allocation0 [shape = 'u32[]', space=smem, size = 0x4, offset = 0x4, fixed_abs, tag = 'smem constant byte address 0x4 - core index']
  #allocation1 [shape = 'u32[144,128]{1,0:T(1,128)}', space=vmem, size = 0x12000, scoped, tag = 'internal scratch']
  %s0 = inlined_call_operand.vmem [shape: f32[16,32], index: 0, kind: input, shape index: {}]
  %s1 = inlined_call_operand.vmem [shape: f32[32,3], index: 1, kind: input, shape index: {}]
  %s2 = inlined_call_operand.vmem [shape: f32[1,3], index: 2, kind: input, shape index: {}]
  %s3 = inlined_call_operand.vmem [shape: f32[16,3], index: 3, kind: output, shape index: {}]
  %s4 = sld [smem:[#allocation0]]
  $region22: #{tpu_custom_call.1} parent=0
    _
  %s6 = ssub.s32 1, %s4
  %s7 = scalar_select 0, %s6, %s4
  // Predicated region
  $region2: #{tpu_custom_call.1} parent=0 // pred_check
    _
  $region3: #{tpu_custom_call.1} parent=0 // pred_check_branch
    %9 = sbr.rel (0) target = $region5
  $region4: #{tpu_custom_call.1} parent=0 // pred_region
    _
  $region5: #{tpu_custom_call.1} parent=0 // pred_fallthru
    _
  // Predicated region
  $region6: #{tpu_custom_call.1} parent=0 // pred_check
    _
  $region7: #{tpu_custom_call.1} parent=0 // pred_check_branch
    %11 = sbr.rel (0) target = $region9
  $region8: #{tpu_custom_call.1} parent=0 // pred_region
    _
  $region9: #{tpu_custom_call.1} parent=0 // pred_fallthru
    _
  // Predicated region
  $region10: #{tpu_custom_call.1} parent=0 // pred_check
    _
  $region11: #{tpu_custom_call.1} parent=0 // pred_check_branch
    %13 = sbr.rel (0) target = $region13
  $region12: #{tpu_custom_call.1} parent=0 // pred_region
    _
  $region13: #{tpu_custom_call.1} parent=0 // pred_fallthru
    _
  %v14 = vld [vmem:[%s0] sm:$0xff]
  %v15 = vld [vmem:[%s0 + $0x8] sm:$0xff]
  %v16 = vld [vmem:[%s1] sm:$0xff]
  %v17 = vld [vmem:[%s1 + $0x8] sm:$0xff]
  %v18 = vld [vmem:[%s1 + $0x10] sm:$0xff]
  %v19 = vld [vmem:[%s1 + $0x18] sm:$0xff]
  %v20 = vld [vmem:[%s2] sm:$0x1]
  %v22 = vlaneseq
  %v23 = vshrl.u32 %v22, 7
  %v24 = vsub.s32 0, %v23
  %v25 = vrot.slane %v20, %v24
  %vm27 = vcmask 261120
  %v29 = vsel %vm27, %v14, 0
  %v32 = vsel %vm27, %v15, 0
  %34 = vmatprep.subr.mxu0 0.0
  %35 = vmatpush1.msra.mxu0 0.0
  %36 = vmatprep.subr.mxu0 0.0
  %37 = vmatpush1.msra.mxu0 0.0
  %38 = vmatprep.subr.mxu0 0.0
  %39 = vmatpush1.msra.mxu0 0.0
  %40 = vmatprep.subr.mxu0 0.0
  %41 = vmatpush1.msra.mxu0 0.0
  %42 = vmatprep.subr.mxu0 0.0
  %43 = vmatpush1.msra.mxu0 0.0
  %44 = vmatprep.subr.mxu0 0.0
  %45 = vmatpush1.msra.mxu0 0.0
  %46 = vmatprep.subr.mxu0 0.0
  %47 = vmatpush1.msra.mxu0 0.0
  %48 = vmatprep.subr.mxu0 0.0
  %49 = vmatpush1.msra.mxu0 0.0
  %50 = vmatprep.subr.mxu0 0.0
  %51 = vmatpush1.msra.mxu0 0.0
  %52 = vmatprep.subr.mxu0 0.0
  %53 = vmatpush1.msra.mxu0 0.0
  %54 = vmatprep.subr.mxu0 0.0
  %55 = vmatpush1.msra.mxu0 0.0
  %56 = vmatprep.subr.mxu0 0.0
  %57 = vmatpush1.msra.mxu0 0.0
  %58 = vmatprep.subr.mxu0 0.0
  %59 = vmatpush1.msra.mxu0 %v19
  %60 = vmatprep.subr.mxu0 0.0
  %61 = vmatpush1.msra.mxu0 %v18
  %62 = vmatprep.subr.mxu0 0.0
  %63 = vmatpush1.msra.mxu0 %v17
  %64 = vmatprep.subr.mxu0 0.0
  %65 = vmatpush1.msra.mxu0 %v16
  %66 = vmatprep.subr.mxu0 0.0
  %67 = vmatpush2.msra.mxu0 0.0
  %68 = vmatprep.subr.mxu0 0.0
  %69 = vmatpush2.msra.mxu0 0.0
  %70 = vmatprep.subr.mxu0 0.0
  %71 = vmatpush2.msra.mxu0 0.0
  %72 = vmatprep.subr.mxu0 0.0
  %73 = vmatpush2.msra.mxu0 0.0
  %74 = vmatprep.subr.mxu0 0.0
  %75 = vmatpush2.msra.mxu0 0.0
  %76 = vmatprep.subr.mxu0 0.0
  %77 = vmatpush2.msra.mxu0 0.0
  %78 = vmatprep.subr.mxu0 0.0
  %79 = vmatpush2.msra.mxu0 0.0
  %80 = vmatprep.subr.mxu0 0.0
  %81 = vmatpush2.msra.mxu0 0.0
  %82 = vmatprep.subr.mxu0 0.0
  %83 = vmatpush2.msra.mxu0 0.0
  %84 = vmatprep.subr.mxu0 0.0
  %85 = vmatpush2.msra.mxu0 0.0
  %86 = vmatprep.subr.mxu0 0.0
  %87 = vmatpush2.msra.mxu0 0.0
  %88 = vmatprep.subr.mxu0 0.0
  %89 = vmatpush2.msra.mxu0 0.0
  %90 = vmatprep.subr.mxu0 0.0
  %91 = vmatpush2.msra.mxu0 0.0
  %92 = vmatprep.subr.mxu0 0.0
  %93 = vmatpush2.msra.mxu0 0.0
  %94 = vmatprep.subr.mxu0 0.0
  %95 = vmatpush2.msra.mxu0 0.0
  %96 = vmatprep.subr.mxu0 0.0
  %97 = vmatpush2.msra.mxu0 0.0
  %98 = vmatprep.mubr.f32.mxu0 0.0
  %99 = vmatmul.mubr.f32.gmra.mxu0 %v29
  %v100 = vpop.f32.mrf.mxu0
  %v101 = vadd.f32 %v25, %v100
  %v102 = vpop.f32.mrf.mxu0
  %103 = vmatprep.mubr.f32.mxu0 0.0
  %104 = vmatmul.mubr.f32.gmra.mxu0 %v32
  %v105 = vpop.f32.mrf.mxu0
  %v106 = vadd.f32 %v25, %v105
  %v107 = vpop.f32.mrf.mxu0
  %108 = vdwg.mxu0
  %v109 = vxor.u32 %v101, 2147483648
  %v110 = vxor.u32 %v106, 2147483648
  %v111 = vmul.f32 %v109, 1.442695
  %v112 = vpow.pop %v111
  %v113 = vmul.f32 %v110, 1.442695
  %v114 = vpow.pop %v113
  %v115 = vadd.f32 %v112, 1.0
  %v116 = vadd.f32 %v114, 1.0
  %v117 = vrcp.pop %v115
  %v118 = vmul.f32 1.0, %v117
  %v119 = vrcp.pop %v116
  %v120 = vmul.f32 1.0, %v119
  %v121 = vmul.f32 %v118, 0.35
  %v122 = vmul.f32 %v120, 0.35
  %v123 = vadd.f32 %v121, 0.05
  %v124 = vadd.f32 %v122, 0.05
  %vm125 = vcmask 23552
  %126 = vst.msk [vmem:[%s3] sm:$0xff] %vm125, %v123
  %127 = vst.msk [vmem:[%s3 + $0x8] sm:$0xff] %vm125, %v124
  // Predicated region
  $region14: #{tpu_custom_call.1} parent=0 // pred_check
    _
  $region15: #{tpu_custom_call.1} parent=0 // pred_check_branch
    %129 = sbr.rel (0) target = $region17
  $region16: #{tpu_custom_call.1} parent=0 // pred_region
    _
  $region17: #{tpu_custom_call.1} parent=0 // pred_fallthru
    _
  // Predicated region
  $region18: #{tpu_custom_call.1} parent=0 // pred_check
    _
  $region19: #{tpu_custom_call.1} parent=0 // pred_check_branch
    %131 = sbr.rel (0) target = $region21
  $region20: #{tpu_custom_call.1} parent=0 // pred_region
    _
  $region21: #{tpu_custom_call.1} parent=0 // pred_fallthru
    _

</llo_original>
